<compile_context>
chip_gen: v7x
topology: tpu7x:2x2x1
jax: 0.10.0
libtpu: 0.0.40
codegen_flags: <defaults>
</compile_context>

<pallas_src>
import math

import jax
import jax.numpy as jnp
from jax.experimental import pallas as pl
from jax.experimental.pallas import tpu as pltpu

_LANE = 128
_TARGET_TILE_BYTES = 4 * 1024 * 1024   # ~4 MiB per operand tile
_MIN_SPLIT_BYTES = 4 * 1024 * 1024     # force >= 4 grid steps above this


def _round_up(x, m):
    return ((x + m - 1) // m) * m


def _dtype_sublane(dtype):
    # Native sublane tile grows as dtypes narrow: (8,128) f32, (16,128) bf16,
    # (32,128) int8/fp8.  Rounding tile rows to this keeps stores unmasked.
    itemsize = jnp.dtype(dtype).itemsize
    return max(8, 32 // max(1, itemsize))


def _residual_add_kernel(out_ref, x_ref, o_ref):
    # Pure elementwise residual add on one (tile_rows, cols) tile.
    # Single vadd body: HBM-bound, so no extra per-element work (v5e has only
    # one vector-store slot — keep the body minimal).
    o_ref[...] = out_ref[...] + x_ref[...]


def _lane_dense_view(shape):
    """Pick a free lane-dense 2D (rows, cols) reshape, or None if impossible."""
    total = math.prod(shape)
    last = shape[-1] if shape else 1
    if last % _LANE == 0:
        return total // last, last
    if total % _LANE == 0:
        return total // _LANE, _LANE
    return None


def _pick_tile_rows(rows, cols, itemsize, sub):
    """Row-tile size: ~4 MiB/operand, dtype-aware sublane multiple, >=4 blocks
    for mid-sized inputs (2 TensorCores x double-buffering on v7x)."""
    cols_padded = _round_up(cols, _LANE)
    bytes_per_row = max(1, cols_padded * itemsize)
    t = max(sub, (_TARGET_TILE_BYTES // bytes_per_row) // sub * sub)
    if rows * cols * itemsize >= _MIN_SPLIT_BYTES and rows >= 4 * sub:
        t = min(t, max(sub, (rows // 4) // sub * sub))
    if t >= rows:
        return rows   # single full-extent block (always a legal block shape)
    return t


def residual_add(fn_out: jax.Array, x: jax.Array, *, donate_fn_out: bool = False):
    """Pallas residual add: fn_out + x."""
    assert fn_out.shape == x.shape and fn_out.dtype == x.dtype
    shape, dtype = x.shape, x.dtype
    itemsize = jnp.dtype(dtype).itemsize
    sub = _dtype_sublane(dtype)

    view = _lane_dense_view(shape)
    if view is not None:
        rows, cols = view
    else:
        # No free lane-dense reshape: keep the full last dim as the block's
        # last dimension (full-extent satisfies the (8,128) rule) and still
        # tile the leading rows to the VMEM byte target — never a single
        # whole-array block.
        rows, cols = max(1, math.prod(shape[:-1])), shape[-1]

    tile_rows = _pick_tile_rows(rows, cols, itemsize, sub)
    grid = (pl.cdiv(rows, tile_rows),)

    n_elems = math.prod(shape)
    n_bytes = n_elems * itemsize
    # Working set: 3 operands x 2 pipeline buffers x (padded) tile, + headroom.
    tile_bytes = _round_up(tile_rows, sub) * _round_up(cols, _LANE) * itemsize
    vmem_limit = int(min(max(3 * 2 * tile_bytes + (4 << 20), 16 << 20), 48 << 20))

    a2 = fn_out.reshape(rows, cols)
    b2 = x.reshape(rows, cols)

    out2 = pl.pallas_call(
        _residual_add_kernel,
        out_shape=jax.ShapeDtypeStruct((rows, cols), dtype),
        grid_spec=pl.GridSpec(
            grid=grid,
            in_specs=[
                pl.BlockSpec((tile_rows, cols), lambda i: (i, 0)),
                pl.BlockSpec((tile_rows, cols), lambda i: (i, 0)),
            ],
            out_specs=pl.BlockSpec((tile_rows, cols), lambda i: (i, 0)),
        ),
        # Aliasing removes only the separate output allocation (HBM traffic is
        # unchanged: read a, read b, write out).  Only enable it when fn_out is
        # genuinely donatable (an intermediate under jit); otherwise XLA would
        # insert a defensive copy, which is strictly worse.
        input_output_aliases=({0: 0} if donate_fn_out else {}),
        cost_estimate=pl.CostEstimate(
            flops=n_elems, transcendentals=0, bytes_accessed=3 * n_bytes),
        compiler_params=pltpu.CompilerParams(
            dimension_semantics=("parallel",),
            vmem_limit_bytes=vmem_limit,
        ),
    )(a2, b2)
    return out2.reshape(shape)


# ----------------------------------------------------------------------------
# Deterministic stand-in for the wrapped `fn`.  In the ViT this is an attention
# block returning (out, head_score); the wrapped fn is arbitrary user code and
# stays in plain JAX.
# ----------------------------------------------------------------------------
def make_fn(key, dim, heads, seq):
    (w_key,) = jax.random.split(key, 1)
    W = jax.random.normal(w_key, (dim, dim), dtype=jnp.float32) * 0.02

    def fn(x):
        # x: (B, N, D)
        out = jnp.einsum("bnd,de->bne", x, W)
        scores = jnp.einsum("bnd,bmd->bnm", x, x) / jnp.sqrt(x.shape[-1])
        scores = jnp.broadcast_to(
            scores[:, None, :, :], (x.shape[0], heads, seq, seq)
        )
        head_score = jax.nn.softmax(scores, axis=-1)
        return out, head_score

    return fn


class ResidualPallas:
    """JAX/Pallas equivalent of vit_pytorch Residual: (fn(x)[0] + x, fn(x)[1])."""

    def __init__(self, fn, donate_fn_out: bool = True):
        # donate_fn_out=True is intended for use under jit, where fn's output
        # is an intermediate and can be aliased into the residual kernel.
        self.fn = fn
        self.donate_fn_out = donate_fn_out

    def __call__(self, x, *kargs, **kwargs):
        out, head_score = self.fn(x, *kargs, **kwargs)
        return residual_add(out, x, donate_fn_out=self.donate_fn_out), head_score


if __name__ == "__main__":
    key = jax.random.PRNGKey(0)
    k_x, k_fn, k_a, k_b, k_c, k_d, k_e, k_f, k_g, k_h = jax.random.split(key, 10)

    # --- Small ViT-ish demo shape (single lane-dense block, jit + aliasing). ---
    B, N, D, H = 2, 8, 32, 4
    x = jax.random.normal(k_x, (B, N, D), dtype=jnp.float32)

    fn = make_fn(k_fn, dim=D, heads=H, seq=N)
    residual = ResidualPallas(fn, donate_fn_out=True)
    apply_residual = jax.jit(residual)           # fn_out is a jit intermediate
    out, head_score = apply_residual(x)
    out = jax.block_until_ready(out)
    head_score = jax.block_until_ready(head_score)

    ref_out, ref_hs = fn(x)
    ref_out = ref_out + x
    assert out.shape == (B, N, D)
    assert head_score.shape == (B, H, N, N)
    assert jnp.allclose(out, ref_out, atol=1e-5, rtol=1e-5)
    assert jnp.allclose(head_score, ref_hs, atol=1e-6, rtol=1e-6)

    # --- Larger lane-dense f32 case: 4 even 2 MiB blocks (multi-block path). ---
    a = jax.random.normal(k_a, (8, 512, 512), dtype=jnp.float32)
    b = jax.random.normal(k_b, (8, 512, 512), dtype=jnp.float32)
    y = jax.block_until_ready(residual_add(a, b))        # eager: no aliasing
    assert jnp.allclose(y, a + b, atol=1e-6, rtol=1e-6)

    # --- Awkward row count: cdiv grid with a partial last block. ---
    c = jax.random.normal(k_c, (2210, 512), dtype=jnp.float32)
    d = jax.random.normal(k_d, (2210, 512), dtype=jnp.float32)
    y2 = jax.block_until_ready(residual_add(c, d))
    assert jnp.allclose(y2, c + d, atol=1e-6, rtol=1e-6)

    # --- bf16 case: dtype-aware (16,128) sublane rounding. ---
    e = jax.random.normal(k_e, (2, 128, 256)).astype(jnp.bfloat16)
    f = jax.random.normal(k_f, (2, 128, 256)).astype(jnp.bfloat16)
    y3 = jax.block_until_ready(residual_add(e, f))
    assert jnp.allclose(y3.astype(jnp.float32), (e + f).astype(jnp.float32))

    # --- Non-lane-dense fallback (last dim not a multiple of 128). ---
    g = jax.random.normal(k_g, (2, 8, 33), dtype=jnp.float32)
    h = jax.random.normal(k_h, (2, 8, 33), dtype=jnp.float32)
    y4 = jax.block_until_ready(residual_add(g, h))
    assert jnp.allclose(y4, g + h, atol=1e-6, rtol=1e-6)

    print("KERNEL_OK")
</pallas_src>

<mosaic_0001>
module attributes {stable_mosaic.version = 11 : i64} {
  func.func @_residual_add_kernel(%arg0: i32, %arg1: memref<4x128xf32, #tpu.memory_space<vmem>>, %arg2: memref<4x128xf32, #tpu.memory_space<vmem>>, %arg3: memref<4x128xf32, #tpu.memory_space<vmem>>) attributes {dimension_semantics = [#tpu.dimension_semantics<parallel>], iteration_bounds = array<i64: 1>, scalar_prefetch = 0 : i64, scratch_operands = 0 : i64, tpu.core_type = #tpu.core_type<tc>, window_params = [{transform_indices = @transform_0, window_bounds = array<i64: 4, 128>}, {transform_indices = @transform_1, window_bounds = array<i64: 4, 128>}, {transform_indices = @transform_2, window_bounds = array<i64: 4, 128>}]} {
    %c0 = arith.constant 0 : index
    %c0_0 = arith.constant 0 : index
    %0 = vector.load %arg1[%c0, %c0_0] : memref<4x128xf32, #tpu.memory_space<vmem>>, vector<4x128xf32>
    %c0_1 = arith.constant 0 : index
    %c0_2 = arith.constant 0 : index
    %1 = vector.load %arg2[%c0_1, %c0_2] : memref<4x128xf32, #tpu.memory_space<vmem>>, vector<4x128xf32>
    %2 = arith.addf %0, %1 : vector<4x128xf32>
    %c0_3 = arith.constant 0 : index
    %c0_4 = arith.constant 0 : index
    %3 = vector.load %arg3[%c0_3, %c0_4] : memref<4x128xf32, #tpu.memory_space<vmem>>, vector<4x128xf32>
    tpu.vector_store %arg3[%c0_3, %c0_4], %2 {strides = array<i32>} : memref<4x128xf32, #tpu.memory_space<vmem>>, vector<4x128xf32>,
    return
  }
  func.func @transform_0(%arg0: i32) -> (i32, i32) {
    %c0_i32 = arith.constant 0 : i32
    %c0_i32_0 = arith.constant 0 : i32
    return %arg0, %c0_i32 : i32, i32
  }
  func.func @transform_1(%arg0: i32) -> (i32, i32) {
    %c0_i32 = arith.constant 0 : i32
    %c0_i32_0 = arith.constant 0 : i32
    return %arg0, %c0_i32 : i32, i32
  }
  func.func @transform_2(%arg0: i32) -> (i32, i32) {
    %c0_i32 = arith.constant 0 : i32
    %c0_i32_0 = arith.constant 0 : i32
    return %arg0, %c0_i32 : i32, i32
  }
}

</mosaic_0001>

<llo_original>
// kernel: _unnamed_function_.1
$region0: #{_unnamed_function_.1}
  #allocation0 [shape = 'u32[]', space=smem, size = 0x4, offset = 0x4, fixed_abs, tag = 'smem constant byte address 0x4 - core index']
  #allocation1 [shape = 'u32[144,128]{1,0:T(1,128)}', space=vmem, size = 0x12000, scoped, tag = 'internal scratch']
  %s0 = inlined_call_operand.vmem [shape: f32[4,128], index: 0, kind: input, shape index: {}, may-alias: {0,2}]
  %s1 = inlined_call_operand.vmem [shape: f32[4,128], index: 1, kind: input, shape index: {}]
  %s2 = inlined_call_operand.vmem [shape: f32[4,128], index: 2, kind: output, shape index: {}, may-alias: {0,2}]
  %s3 = sld [smem:[#allocation0]]
  $region18: #{_unnamed_function_.1} parent=0
    _
  %s5 = ssub.s32 1, %s3
  %s6 = scalar_select 0, %s5, %s3
  // Predicated region
  $region2: #{_unnamed_function_.1} parent=0 // pred_check
    _
  $region3: #{_unnamed_function_.1} parent=0 // pred_check_branch
    %8 = sbr.rel (0) target = $region5
  $region4: #{_unnamed_function_.1} parent=0 // pred_region
    _
  $region5: #{_unnamed_function_.1} parent=0 // pred_fallthru
    _
  // Predicated region
  $region6: #{_unnamed_function_.1} parent=0 // pred_check
    _
  $region7: #{_unnamed_function_.1} parent=0 // pred_check_branch
    %10 = sbr.rel (0) target = $region9
  $region8: #{_unnamed_function_.1} parent=0 // pred_region
    _
  $region9: #{_unnamed_function_.1} parent=0 // pred_fallthru
    _
  %v11 = vld [vmem:[%s0] sm:$0xf]
  %v12 = vld [vmem:[%s1] sm:$0xf]
  %v13 = vadd.f32 %v11, %v12
  %14 = vst [vmem:[%s2] sm:$0xf] %v13
  // Predicated region
  $region10: #{_unnamed_function_.1} parent=0 // pred_check
    _
  $region11: #{_unnamed_function_.1} parent=0 // pred_check_branch
    %16 = sbr.rel (0) target = $region13
  $region12: #{_unnamed_function_.1} parent=0 // pred_region
    _
  $region13: #{_unnamed_function_.1} parent=0 // pred_fallthru
    _
  // Predicated region
  $region14: #{_unnamed_function_.1} parent=0 // pred_check
    _
  $region15: #{_unnamed_function_.1} parent=0 // pred_check_branch
    %18 = sbr.rel (0) target = $region17
  $region16: #{_unnamed_function_.1} parent=0 // pred_region
    _
  $region17: #{_unnamed_function_.1} parent=0 // pred_fallthru
    _

</llo_original>
